<compile_context>
chip_gen: v7x
topology: tpu7x:2x2x1
jax: 0.10.0
libtpu: 0.0.40
codegen_flags: <defaults>
</compile_context>

<pallas_src>
import functools

import numpy as np
import jax
import jax.numpy as jnp
from jax.experimental import pallas as pl
from jax.experimental.pallas import tpu as pltpu


def _build_pool_matrix(seq_len, kernel_size, stride, pad, l_out):
    """A[o, t] such that (A @ x)[o] == mean over the replicate-padded window o."""
    a = np.zeros((l_out, seq_len), dtype=np.float32)
    inv_k = 1.0 / float(kernel_size)
    for o in range(l_out):
        for k in range(kernel_size):
            t = o * stride + k - pad          # index into the (virtual) padded axis
            t = min(max(t, 0), seq_len - 1)   # replicate padding == clamp
            a[o, t] += inv_k
    return jnp.asarray(a)


def _moving_avg_kernel(a_ref, x_ref, o_ref, *, batch_tile):
    # a_ref: (L_out, L) f32 pooling matrix (same block every grid step)
    # x_ref: (Bt, L, Ct) input block
    # o_ref: (Bt, L_out, Ct) output block
    a = a_ref[...]
    for i in range(batch_tile):                       # small static unroll (<= 8)
        xi = x_ref[i].astype(jnp.float32)             # (L, Ct); per-row cast
        yi = jnp.dot(
            a, xi,
            precision=jax.lax.Precision.HIGHEST,      # full-f32 MXU window sum
            preferred_element_type=jnp.float32,
        )                                             # (L_out, Ct)
        o_ref[i] = yi.astype(o_ref.dtype)


def _choose_batch_tile(batch, row_bytes, n_c_tiles, *,
                       max_bt=8, target_bytes=1 << 20, min_steps=8):
    """Largest divisor of `batch` that keeps blocks ~<=1MiB, <=max_bt rows,
    while leaving enough grid steps for both TensorCores / pipelining."""
    divisors = [d for d in range(1, batch + 1) if batch % d == 0]
    candidates = [d for d in divisors
                  if d <= max_bt and d * row_bytes <= target_bytes]
    bt = max(candidates) if candidates else 1
    while bt > 1 and (batch // bt) * n_c_tiles < min_steps:
        bt = max(d for d in divisors if d < bt)
    return bt


def moving_avg(x, kernel_size, stride):
    """x: (B, L, C) -> (B, L_out, C); replicates PyTorch moving_avg.forward."""
    B, L, C = x.shape
    pad = (kernel_size - 1) // 2
    L_pad = L + 2 * pad
    L_out = (L_pad - kernel_size) // stride + 1

    a = _build_pool_matrix(L, kernel_size, stride, pad, L_out)

    # Channel tiling: lane-dense 128-wide tiles when possible, else full extent.
    c_tile = 128 if (C % 128 == 0) else C
    n_c = C // c_tile

    itemsize = jnp.dtype(x.dtype).itemsize
    row_bytes = L * c_tile * itemsize
    bt = _choose_batch_tile(B, row_bytes, n_c)
    n_b = B // bt

    kernel = functools.partial(_moving_avg_kernel, batch_tile=bt)

    return pl.pallas_call(
        kernel,
        out_shape=jax.ShapeDtypeStruct((B, L_out, C), x.dtype),
        grid=(n_b, n_c),
        in_specs=[
            pl.BlockSpec((L_out, L), lambda b, c: (0, 0)),          # pooling matrix
            pl.BlockSpec((bt, L, c_tile), lambda b, c: (b, 0, c)),  # input block
        ],
        out_specs=pl.BlockSpec((bt, L_out, c_tile), lambda b, c: (b, 0, c)),
        compiler_params=pltpu.CompilerParams(
            dimension_semantics=("parallel", "parallel"),
        ),
    )(a, x)


def _moving_avg_ref(x, kernel_size, stride):
    """Pure-JAX reference mirroring the PyTorch module."""
    B, L, C = x.shape
    pad = (kernel_size - 1) // 2
    front = jnp.broadcast_to(x[:, 0:1, :], (B, pad, C))
    end = jnp.broadcast_to(x[:, -1:, :], (B, pad, C))
    xp = jnp.concatenate([front, x, end], axis=1)
    L_pad = L + 2 * pad
    L_out = (L_pad - kernel_size) // stride + 1
    out = jnp.zeros((B, L_out, C), jnp.float32)
    for k in range(kernel_size):
        out = out + xp[:, k: k + (L_out - 1) * stride + 1: stride, :].astype(jnp.float32)
    return (out / kernel_size).astype(x.dtype)


if __name__ == "__main__":
    key = jax.random.PRNGKey(0)

    # Config 1: small test shape (batch=2, seq_len=16, channels=8), K=5, stride=1.
    B, L, C = 2, 16, 8
    x = jax.random.normal(key, (B, L, C), dtype=jnp.float32)
    out = jax.block_until_ready(moving_avg(x, kernel_size=5, stride=1))
    ref = _moving_avg_ref(x, kernel_size=5, stride=1)
    assert out.shape == ref.shape, (out.shape, ref.shape)
    assert jnp.allclose(out, ref, atol=1e-5, rtol=1e-5), "mismatch vs reference (K=5)"

    # Config 2: Autoformer-style decomposition window (kernel_size=25, stride=1).
    x2 = jax.random.normal(jax.random.PRNGKey(1), (2, 32, 8), dtype=jnp.float32)
    out2 = jax.block_until_ready(moving_avg(x2, kernel_size=25, stride=1))
    ref2 = _moving_avg_ref(x2, kernel_size=25, stride=1)
    assert out2.shape == ref2.shape, (out2.shape, ref2.shape)
    assert jnp.allclose(out2, ref2, atol=1e-5, rtol=1e-5), "mismatch vs reference (K=25)"

    print("KERNEL_OK")
</pallas_src>

<mosaic_0001>
module attributes {stable_mosaic.version = 11 : i64} {
  func.func @_moving_avg_kernel(%arg0: i32, %arg1: i32, %arg2: memref<16x16xf32, #tpu.memory_space<vmem>>, %arg3: memref<1x16x8xf32, #tpu.memory_space<vmem>>, %arg4: memref<1x16x8xf32, #tpu.memory_space<vmem>>) attributes {dimension_semantics = [#tpu.dimension_semantics<parallel>, #tpu.dimension_semantics<parallel>], iteration_bounds = array<i64: 2, 1>, scalar_prefetch = 0 : i64, scratch_operands = 0 : i64, tpu.core_type = #tpu.core_type<tc>, window_params = [{pipeline_mode = #tpu.pipeline_mode<synchronous>, transform_indices = @transform_0, window_bounds = array<i64: 16, 16>}, {transform_indices = @transform_1, window_bounds = array<i64: 1, 16, 8>}, {transform_indices = @transform_2, window_bounds = array<i64: 1, 16, 8>}]} {
    %c0 = arith.constant 0 : index
    %c0_0 = arith.constant 0 : index
    %0 = vector.load %arg2[%c0, %c0_0] : memref<16x16xf32, #tpu.memory_space<vmem>>, vector<16x16xf32>
    %c0_1 = arith.constant 0 : index
    %c0_2 = arith.constant 0 : index
    %c0_3 = arith.constant 0 : index
    %1 = vector.load %arg3[%c0_1, %c0_2, %c0_3] : memref<1x16x8xf32, #tpu.memory_space<vmem>>, vector<1x16x8xf32>
    %2 = vector.shape_cast %1 : vector<1x16x8xf32> to vector<16x8xf32>
    %cst = arith.constant dense<0.000000e+00> : vector<16x8xf32>
    %3 = tpu.matmul %0, %2, %cst {dimension_numbers = #tpu.dot_dimension_numbers<[1], [0], [0], [1], [0, 0, 1, 1], [], []>, precision = #tpu.contract_precision<fp32>} : vector<16x16xf32>, vector<16x8xf32>, vector<16x8xf32> -> vector<16x8xf32>
    %c0_4 = arith.constant 0 : index
    %c0_5 = arith.constant 0 : index
    %c0_6 = arith.constant 0 : index
    %4 = vector.load %arg4[%c0_4, %c0_5, %c0_6] : memref<1x16x8xf32, #tpu.memory_space<vmem>>, vector<1x16x8xf32>
    %5 = vector.shape_cast %4 : vector<1x16x8xf32> to vector<16x8xf32>
    %6 = vector.shape_cast %3 : vector<16x8xf32> to vector<1x16x8xf32>
    tpu.vector_store %arg4[%c0_4, %c0_5, %c0_6], %6 {strides = array<i32>} : memref<1x16x8xf32, #tpu.memory_space<vmem>>, vector<1x16x8xf32>,
    return
  }
  func.func @transform_0(%arg0: i32, %arg1: i32) -> (i32, i32) {
    %c0_i32 = arith.constant 0 : i32
    %c0_i32_0 = arith.constant 0 : i32
    %c0_i32_1 = arith.constant 0 : i32
    return %c0_i32, %c0_i32_0 : i32, i32
  }
  func.func @transform_1(%arg0: i32, %arg1: i32) -> (i32, i32, i32) {
    %c0_i32 = arith.constant 0 : i32
    %c0_i32_0 = arith.constant 0 : i32
    return %arg0, %c0_i32, %arg1 : i32, i32, i32
  }
  func.func @transform_2(%arg0: i32, %arg1: i32) -> (i32, i32, i32) {
    %c0_i32 = arith.constant 0 : i32
    %c0_i32_0 = arith.constant 0 : i32
    return %arg0, %c0_i32, %arg1 : i32, i32, i32
  }
}

</mosaic_0001>

<llo_original>
// kernel: tpu_custom_call.1
$region0: #{tpu_custom_call.1}
  #allocation0 [shape = 'u32[]', space=smem, size = 0x4, offset = 0x4, fixed_abs, tag = 'smem constant byte address 0x4 - core index']
  #allocation1 [shape = 'u32[144,128]{1,0:T(1,128)}', space=vmem, size = 0x12000, scoped, tag = 'internal scratch']
  %s0 = inlined_call_operand.vmem [shape: f32[16,16], index: 0, kind: input, shape index: {}]
  %s1 = inlined_call_operand.vmem [shape: f32[2,16,8], index: 1, kind: input, shape index: {}]
  %s2 = inlined_call_operand.vmem [shape: f32[2,16,8], index: 2, kind: output, shape index: {}]
  %s3 = sld [smem:[#allocation0]]
  $region41: #{tpu_custom_call.1} parent=0
    _
  %s5 = ssub.s32 1, %s3
  %s6 = scalar_select 0, %s5, %s3
  loop: start=0, step=1, limit=4
  $region2: #{tpu_custom_call.1} parent=0 // loop_pre_header
    _
  $region3: #{tpu_custom_call.1} parent=0 // loop_header
    %s8 = sphi 0, %s12
    %p9 = scmp.ge.s32.totalorder %s8, 4
    %s15 = sphi 0, %s27
    %s16 = sphi 0, %s23
    %s17 = sphi 0, %s15
    %s18 = sphi 0, %s16
    %s19 = sphi 0, %s17
    %s20 = sphi 0, %s18
    %s28 = sphi 0, %s28
    %s30 = sphi 0, %s28
    %s31 = sphi 0, %s30
    %s45 = sphi 0, %s31
    %s53 = sphi 0, %s55
    %s56 = sphi 0, %s53
    %s57 = sphi 0, %s56
    %s73 = sphi 0, %s57
    %s81 = sphi 0, %s83
    %s84 = sphi 0, %s81
    %s85 = sphi 0, %s84
    %s101 = sphi 0, %s85
  $region4: #{tpu_custom_call.1} parent=0 // loop_header_branch
    %11 = sbr.rel (%p9) target = $region8
  $region5: #{tpu_custom_call.1} parent=0 // loop_body
    %s13 = ssub.s32 %s8, 1
    %s14 = ssub.s32 %s8, 2
    %s21 = sadd.s32 1, %s16
    %p22 = scmp.ge.s32.totalorder %s21, 1
    %s23 = scalar_select %p22, 0, %s21
    %s24 = sadd.s32 1, %s15
    %s25 = scalar_select %p22, %s24, %s15
    %p26 = scmp.ge.s32.totalorder %s25, 2
    %s27 = scalar_select %p26, 0, %s25
    %s29 = sadd.s32 %s28, 1
    %p32 = scmp.eq.s32.totalorder %s8, 1
    %p33 = scmp.ne.s32.totalorder %s28, %s30
    %p34 = scmp.eq.s32.totalorder %s8, 0
    %p35 = por %p33, %p34
    %p36 = scmp.ne.s32.totalorder %s28, %s30
    %p37 = scmp.eq.s32.totalorder %s13, 1
    %p38 = por %p36, %p37
    %p39 = scmp.ne.s32.totalorder %s30, %s31
    %p40 = scmp.eq.s32.totalorder %s13, 0
    %p41 = por %p39, %p40
    %p42 = scmp.ne.s32.totalorder %s30, %s31
    %p43 = scmp.eq.s32.totalorder %s14, 1
    %p44 = por %p42, %p43
    %p46 = scmp.ne.s32.totalorder %s31, %s45
    %p47 = scmp.eq.s32.totalorder %s14, 0
    %p48 = por %p46, %p47
    %s49 = ssub.s32 %s15, %s27
    %s50 = ssub.s32 %s16, %s23
    %s51 = sor.u32 %s49, %s50
    %p52 = scmp.eq.s32.totalorder %s51, 0
    %s54 = sadd.s32 %s53, 1
    %s55 = scalar_select %p52, %s53, %s54
    %p58 = pneg %p52
    %p59 = scmp.eq.s32.totalorder %s8, 1
    %p60 = por %p58, %p59
    %p61 = scmp.ne.s32.totalorder %s53, %s56
    %p62 = scmp.eq.s32.totalorder %s8, 0
    %p63 = por %p61, %p62
    %p64 = scmp.ne.s32.totalorder %s53, %s56
    %p65 = scmp.eq.s32.totalorder %s13, 1
    %p66 = por %p64, %p65
    %p67 = scmp.ne.s32.totalorder %s56, %s57
    %p68 = scmp.eq.s32.totalorder %s13, 0
    %p69 = por %p67, %p68
    %p70 = scmp.ne.s32.totalorder %s56, %s57
    %p71 = scmp.eq.s32.totalorder %s14, 1
    %p72 = por %p70, %p71
    %p74 = scmp.ne.s32.totalorder %s57, %s73
    %p75 = scmp.eq.s32.totalorder %s14, 0
    %p76 = por %p74, %p75
    %s77 = ssub.s32 %s15, %s27
    %s78 = ssub.s32 %s16, %s23
    %s79 = sor.u32 %s77, %s78
    %p80 = scmp.eq.s32.totalorder %s79, 0
    %s82 = sadd.s32 %s81, 1
    %s83 = scalar_select %p80, %s81, %s82
    %p86 = pneg %p80
    %p87 = scmp.eq.s32.totalorder %s8, 1
    %p88 = por %p86, %p87
    %p89 = scmp.ne.s32.totalorder %s81, %s84
    %p90 = scmp.eq.s32.totalorder %s8, 0
    %p91 = por %p89, %p90
    %p92 = scmp.ne.s32.totalorder %s81, %s84
    %p93 = scmp.eq.s32.totalorder %s13, 1
    %p94 = por %p92, %p93
    %p95 = scmp.ne.s32.totalorder %s84, %s85
    %p96 = scmp.eq.s32.totalorder %s13, 0
    %p97 = por %p95, %p96
    %p98 = scmp.ne.s32.totalorder %s84, %s85
    %p99 = scmp.eq.s32.totalorder %s14, 1
    %p100 = por %p98, %p99
    %p102 = scmp.ne.s32.totalorder %s85, %s101
    %p103 = scmp.eq.s32.totalorder %s14, 0
    %p104 = por %p102, %p103
    %p105 = scmp.le.s32.totalorder 1, %s8
    %p106 = scmp.lt.s32.totalorder %s8, 3
    %p107 = pnand %p105, %p106
    %p108 = pneg %p107
    // Predicated region
    $region9: #{tpu_custom_call.1} parent=5 // pred_check
      _
    $region10: #{tpu_custom_call.1} parent=5 // pred_check_branch
      %110 = sbr.rel (%p107) target = $region12
    $region11: #{tpu_custom_call.1} parent=5 // pred_region
      %s111 = ssub.s32 %s8, 1
      // Predicated region
      $region13: #{tpu_custom_call.1} parent=11 // pred_check
        %p112 = pneg %p41
      $region14: #{tpu_custom_call.1} parent=11 // pred_check_branch
        %114 = sbr.rel (%p112) target = $region16
      $region15: #{tpu_custom_call.1} parent=11 // pred_region
        _
      $region16: #{tpu_custom_call.1} parent=11 // pred_fallthru
        _
    $region12: #{tpu_custom_call.1} parent=5 // pred_fallthru
      _
    %p115 = scmp.lt.s32.totalorder %s8, 2
    // Predicated region
    $region17: #{tpu_custom_call.1} parent=5 // pred_check
      %p116 = pneg %p115
    $region18: #{tpu_custom_call.1} parent=5 // pred_check_branch
      %118 = sbr.rel (%p116) target = $region20
    $region19: #{tpu_custom_call.1} parent=5 // pred_region
      // Predicated region
      $region21: #{tpu_custom_call.1} parent=19 // pred_check
        %p119 = pneg %p63
      $region22: #{tpu_custom_call.1} parent=19 // pred_check_branch
        %121 = sbr.rel (%p119) target = $region24
      $region23: #{tpu_custom_call.1} parent=19 // pred_region
        %p122 = scmp.lt.s32.totalorder %s15, 1
        %s123 = scalar_select %p122, %s15, 1
        %p124 = scmp.lt.s32.totalorder %s16, 0
        %s125 = scalar_select %p124, %s16, 0
        %s126 = smul.addr %s123, 2
        %s127 = sadd.s32 %s125, %s126
        %s128 = smul.addr %s127, 8
        %s129 = scalar_lea.vmem %s1, %s128
      $region24: #{tpu_custom_call.1} parent=19 // pred_fallthru
        _
    $region20: #{tpu_custom_call.1} parent=5 // pred_fallthru
      _
    %p130 = scmp.le.s32.totalorder 1, %s8
    %p131 = scmp.lt.s32.totalorder %s8, 3
    %p132 = pnand %p130, %p131
    %p133 = pneg %p132
    // Predicated region
    $region25: #{tpu_custom_call.1} parent=5 // pred_check
      _
    $region26: #{tpu_custom_call.1} parent=5 // pred_check_branch
      %135 = sbr.rel (%p132) target = $region28
    $region27: #{tpu_custom_call.1} parent=5 // pred_region
      %s136 = ssub.s32 %s8, 1
      %p137 = pneg %p41
      %p138 = pneg %p38
      %p139 = scmp.lt.s32.totalorder %s17, 1
      %s140 = scalar_select %p139, %s17, 1
      %p141 = scmp.lt.s32.totalorder %s18, 0
      %s142 = scalar_select %p141, %s18, 0
      %s143 = smul.addr %s140, 2
      %s144 = sadd.s32 %s142, %s143
      %s145 = smul.addr %s144, 8
      %s146 = scalar_lea.vmem %s1, %s145
      %p147 = pneg %p69
      %p148 = pneg %p66
      %p149 = pneg %p97
      %p150 = pneg %p94
      %p151 = scmp.lt.s32.totalorder %s17, 1
      %s152 = scalar_select %p151, %s17, 1
      %p153 = scmp.lt.s32.totalorder %s18, 0
      %s154 = scalar_select %p153, %s18, 0
      %s155 = smul.addr %s152, 2
      %s156 = sadd.s32 %s154, %s155
      %s157 = smul.addr %s156, 8
      %s158 = scalar_lea.vmem %s2, %s157
      %p159 = scmp.lt.s32.totalorder %s17, 1
      %s160 = scalar_select %p159, %s17, 1
      %p161 = scmp.lt.s32.totalorder %s18, 0
      %s162 = scalar_select %p161, %s18, 0
      %s163 = smul.addr %s160, 2
      %s164 = sadd.s32 %s162, %s163
      %s165 = smul.addr %s164, 8
      %s166 = scalar_lea.vmem %s1, %s165
      %p167 = scmp.lt.s32.totalorder %s17, 1
      %s168 = scalar_select %p167, %s17, 1
      %p169 = scmp.lt.s32.totalorder %s18, 0
      %s170 = scalar_select %p169, %s18, 0
      %s171 = smul.addr %s168, 2
      %s172 = sadd.s32 %s170, %s171
      %s173 = smul.addr %s172, 8
      %s174 = scalar_lea.vmem %s2, %s173
      %v175 = vld [vmem:[%s0] sm:$0xff]
      %v176 = vld [vmem:[%s0 + $0x8] sm:$0xff]
      %v177 = vld [vmem:[%s166] sm:$0xff]
      %v178 = vld [vmem:[%s166 + $0x8] sm:$0xff]
      %vm179 = vcmask 130048
      %v181 = vsel %vm179, %v175, 0
      %v184 = vsel %vm179, %v176, 0
      %186 = vmatprep.subr.mxu0 0.0
      %v187 = vand.u32 %v177, 4294901760
      %188 = vmatpush1.msra.mxu0 %v187
      %189 = vmatprep.subr.mxu0 0.0
      %v190 = vand.u32 %v178, 4294901760
      %191 = vmatpush1.msra.mxu0 %v190
      %192 = vmatprep.subr.mxu0 0.0
      %193 = vmatpush1.msra.mxu0 0.0
      %194 = vmatprep.subr.mxu0 0.0
      %195 = vmatpush1.msra.mxu0 0.0
      %196 = vmatprep.subr.mxu0 0.0
      %197 = vmatpush1.msra.mxu0 0.0
      %198 = vmatprep.subr.mxu0 0.0
      %199 = vmatpush1.msra.mxu0 0.0
      %200 = vmatprep.subr.mxu0 0.0
      %201 = vmatpush1.msra.mxu0 0.0
      %202 = vmatprep.subr.mxu0 0.0
      %203 = vmatpush1.msra.mxu0 0.0
      %204 = vmatprep.subr.mxu0 0.0
      %205 = vmatpush1.msra.mxu0 0.0
      %206 = vmatprep.subr.mxu0 0.0
      %207 = vmatpush1.msra.mxu0 0.0
      %208 = vmatprep.subr.mxu0 0.0
      %209 = vmatpush1.msra.mxu0 0.0
      %210 = vmatprep.subr.mxu0 0.0
      %211 = vmatpush1.msra.mxu0 0.0
      %212 = vmatprep.subr.mxu0 0.0
      %213 = vmatpush1.msra.mxu0 0.0
      %214 = vmatprep.subr.mxu0 0.0
      %215 = vmatpush1.msra.mxu0 0.0
      %216 = vmatprep.subr.mxu0 0.0
      %217 = vmatpush1.msra.mxu0 0.0
      %218 = vmatprep.subr.mxu0 0.0
      %219 = vmatpush1.msra.mxu0 0.0
      %220 = vmatprep.subr.mxu0 0.0
      %221 = vmatpush1.msra.mxu0 0.0
      %222 = vmatprep.subr.mxu0 0.0
      %223 = vmatpush1.msra.mxu0 0.0
      %224 = vmatprep.subr.mxu0 0.0
      %225 = vmatpush1.msra.mxu0 0.0
      %226 = vmatprep.subr.mxu0 0.0
      %227 = vmatpush1.msra.mxu0 0.0
      %228 = vmatprep.subr.mxu0 0.0
      %229 = vmatpush1.msra.mxu0 0.0
      %230 = vmatprep.subr.mxu0 0.0
      %231 = vmatpush1.msra.mxu0 0.0
      %232 = vmatprep.subr.mxu0 0.0
      %233 = vmatpush1.msra.mxu0 0.0
      %234 = vmatprep.subr.mxu0 0.0
      %235 = vmatpush1.msra.mxu0 0.0
      %236 = vmatprep.subr.mxu0 0.0
      %237 = vmatpush1.msra.mxu0 0.0
      %238 = vmatprep.subr.mxu0 0.0
      %239 = vmatpush1.msra.mxu0 0.0
      %240 = vmatprep.subr.mxu0 0.0
      %241 = vmatpush1.msra.mxu0 0.0
      %242 = vmatprep.subr.mxu0 0.0
      %243 = vmatpush1.msra.mxu0 0.0
      %244 = vmatprep.subr.mxu0 0.0
      %245 = vmatpush1.msra.mxu0 0.0
      %246 = vmatprep.subr.mxu0 0.0
      %247 = vmatpush1.msra.mxu0 0.0
      %248 = vmatprep.subr.mxu0 0.0
      %249 = vmatpush1.msra.mxu0 0.0
      %250 = vmatprep.subr.mxu0 0.0
      %251 = vmatpush1.msra.mxu0 0.0
      %252 = vmatprep.mubr.f32.mxu0 0.0
      %v253 = vand.u32 %v181, 4294901760
      %v254 = vsub.f32 %v181, %v253
      %v255 = vand.u32 %v254, 4294901760
      %v256 = vsub.f32 %v254, %v255
      %v257 = vand.u32 %v256, 4294901760
      %258 = vmatmul.mubr.f32.gmra.mrb[0].mxu0 %v257
      %v259 = vpop.f32.mrb[0].mxu0
      %v260 = vadd.f32 0.0, %v259
      %v261 = vpop.f32.mrb[0].mxu0
      %262 = vmatprep.mubr.f32.mxu0 0.0
      %v263 = vand.u32 %v184, 4294901760
      %v264 = vsub.f32 %v184, %v263
      %v265 = vand.u32 %v264, 4294901760
      %v266 = vsub.f32 %v264, %v265
      %v267 = vand.u32 %v266, 4294901760
      %268 = vmatmul.mubr.f32.gmra.mrb[0].mxu0 %v267
      %v269 = vpop.f32.mrb[0].mxu0
      %v270 = vadd.f32 0.0, %v269
      %v271 = vpop.f32.mrb[0].mxu0
      %272 = vdwg.mxu0
      %273 = vmatprep.subr.mxu0 0.0
      %v274 = vand.u32 %v177, 4294901760
      %v275 = vsub.f32 %v177, %v274
      %v276 = vand.u32 %v275, 4294901760
      %v277 = vsub.f32 %v275, %v276
      %v278 = vand.u32 %v277, 4294901760
      %279 = vmatpush1.msra.mxu0 %v278
      %280 = vmatprep.subr.mxu0 0.0
      %v281 = vand.u32 %v178, 4294901760
      %v282 = vsub.f32 %v178, %v281
      %v283 = vand.u32 %v282, 4294901760
      %v284 = vsub.f32 %v282, %v283
      %v285 = vand.u32 %v284, 4294901760
      %286 = vmatpush1.msra.mxu0 %v285
      %287 = vmatprep.subr.mxu0 0.0
      %288 = vmatpush1.msra.mxu0 0.0
      %289 = vmatprep.subr.mxu0 0.0
      %290 = vmatpush1.msra.mxu0 0.0
      %291 = vmatprep.subr.mxu0 0.0
      %292 = vmatpush1.msra.mxu0 0.0
      %293 = vmatprep.subr.mxu0 0.0
      %294 = vmatpush1.msra.mxu0 0.0
      %295 = vmatprep.subr.mxu0 0.0
      %296 = vmatpush1.msra.mxu0 0.0
      %297 = vmatprep.subr.mxu0 0.0
      %298 = vmatpush1.msra.mxu0 0.0
      %299 = vmatprep.subr.mxu0 0.0
      %300 = vmatpush1.msra.mxu0 0.0
      %301 = vmatprep.subr.mxu0 0.0
      %302 = vmatpush1.msra.mxu0 0.0
      %303 = vmatprep.subr.mxu0 0.0
      %304 = vmatpush1.msra.mxu0 0.0
      %305 = vmatprep.subr.mxu0 0.0
      %306 = vmatpush1.msra.mxu0 0.0
      %307 = vmatprep.subr.mxu0 0.0
      %308 = vmatpush1.msra.mxu0 0.0
      %309 = vmatprep.subr.mxu0 0.0
      %310 = vmatpush1.msra.mxu0 0.0
      %311 = vmatprep.subr.mxu0 0.0
      %312 = vmatpush1.msra.mxu0 0.0
      %313 = vmatprep.subr.mxu0 0.0
      %314 = vmatpush1.msra.mxu0 0.0
      %315 = vmatprep.subr.mxu0 0.0
      %316 = vmatpush1.msra.mxu0 0.0
      %317 = vmatprep.subr.mxu0 0.0
      %318 = vmatpush1.msra.mxu0 0.0
      %319 = vmatprep.subr.mxu0 0.0
      %320 = vmatpush1.msra.mxu0 0.0
      %321 = vmatprep.subr.mxu0 0.0
      %322 = vmatpush1.msra.mxu0 0.0
      %323 = vmatprep.subr.mxu0 0.0
      %324 = vmatpush1.msra.mxu0 0.0
      %325 = vmatprep.subr.mxu0 0.0
      %326 = vmatpush1.msra.mxu0 0.0
      %327 = vmatprep.subr.mxu0 0.0
      %328 = vmatpush1.msra.mxu0 0.0
      %329 = vmatprep.subr.mxu0 0.0
      %330 = vmatpush1.msra.mxu0 0.0
      %331 = vmatprep.subr.mxu0 0.0
      %332 = vmatpush1.msra.mxu0 0.0
      %333 = vmatprep.subr.mxu0 0.0
      %334 = vmatpush1.msra.mxu0 0.0
      %335 = vmatprep.subr.mxu0 0.0
      %336 = vmatpush1.msra.mxu0 0.0
      %337 = vmatprep.subr.mxu0 0.0
      %338 = vmatpush1.msra.mxu0 0.0
      %339 = vmatprep.subr.mxu0 0.0
      %340 = vmatpush1.msra.mxu0 0.0
      %341 = vmatprep.subr.mxu0 0.0
      %342 = vmatpush1.msra.mxu0 0.0
      %343 = vmatprep.subr.mxu0 0.0
      %344 = vmatpush1.msra.mxu0 0.0
      %345 = vmatprep.subr.mxu0 0.0
      %346 = vmatpush1.msra.mxu0 0.0
      %347 = vmatprep.mubr.f32.mxu0 0.0
      %v348 = vand.u32 %v181, 4294901760
      %349 = vmatmul.mubr.f32.gmra.mrb[0].mxu0 %v348
      %v350 = vpop.f32.mrb[0].mxu0
      %v351 = vadd.f32 %v260, %v350
      %v352 = vpop.f32.mrb[0].mxu0
      %353 = vmatprep.mubr.f32.mxu0 0.0
      %v354 = vand.u32 %v184, 4294901760
      %355 = vmatmul.mubr.f32.gmra.mrb[0].mxu0 %v354
      %v356 = vpop.f32.mrb[0].mxu0
      %v357 = vadd.f32 %v270, %v356
      %v358 = vpop.f32.mrb[0].mxu0
      %359 = vdwg.mxu0
      %360 = vmatprep.subr.mxu0 0.0
      %v361 = vand.u32 %v177, 4294901760
      %v362 = vsub.f32 %v177, %v361
      %363 = vmatpush1.msra.mxu0 %v362
      %364 = vmatprep.subr.mxu0 0.0
      %v365 = vand.u32 %v178, 4294901760
      %v366 = vsub.f32 %v178, %v365
      %367 = vmatpush1.msra.mxu0 %v366
      %368 = vmatprep.subr.mxu0 0.0
      %369 = vmatpush1.msra.mxu0 0.0
      %370 = vmatprep.subr.mxu0 0.0
      %371 = vmatpush1.msra.mxu0 0.0
      %372 = vmatprep.subr.mxu0 0.0
      %373 = vmatpush1.msra.mxu0 0.0
      %374 = vmatprep.subr.mxu0 0.0
      %375 = vmatpush1.msra.mxu0 0.0
      %376 = vmatprep.subr.mxu0 0.0
      %377 = vmatpush1.msra.mxu0 0.0
      %378 = vmatprep.subr.mxu0 0.0
      %379 = vmatpush1.msra.mxu0 0.0
      %380 = vmatprep.subr.mxu0 0.0
      %381 = vmatpush1.msra.mxu0 0.0
      %382 = vmatprep.subr.mxu0 0.0
      %383 = vmatpush1.msra.mxu0 0.0
      %384 = vmatprep.subr.mxu0 0.0
      %385 = vmatpush1.msra.mxu0 0.0
      %386 = vmatprep.subr.mxu0 0.0
      %387 = vmatpush1.msra.mxu0 0.0
      %388 = vmatprep.subr.mxu0 0.0
      %389 = vmatpush1.msra.mxu0 0.0
      %390 = vmatprep.subr.mxu0 0.0
      %391 = vmatpush1.msra.mxu0 0.0
      %392 = vmatprep.subr.mxu0 0.0
      %393 = vmatpush1.msra.mxu0 0.0
      %394 = vmatprep.subr.mxu0 0.0
      %395 = vmatpush1.msra.mxu0 0.0
      %396 = vmatprep.subr.mxu0 0.0
      %397 = vmatpush1.msra.mxu0 0.0
      %398 = vmatprep.subr.mxu0 0.0
      %399 = vmatpush1.msra.mxu0 0.0
      %400 = vmatprep.subr.mxu0 0.0
      %401 = vmatpush1.msra.mxu0 0.0
      %402 = vmatprep.subr.mxu0 0.0
      %403 = vmatpush1.msra.mxu0 0.0
      %404 = vmatprep.subr.mxu0 0.0
      %405 = vmatpush1.msra.mxu0 0.0
      %406 = vmatprep.subr.mxu0 0.0
      %407 = vmatpush1.msra.mxu0 0.0
      %408 = vmatprep.subr.mxu0 0.0
      %409 = vmatpush1.msra.mxu0 0.0
      %410 = vmatprep.subr.mxu0 0.0
      %411 = vmatpush1.msra.mxu0 0.0
      %412 = vmatprep.subr.mxu0 0.0
      %413 = vmatpush1.msra.mxu0 0.0
      %414 = vmatprep.subr.mxu0 0.0
      %415 = vmatpush1.msra.mxu0 0.0
      %416 = vmatprep.subr.mxu0 0.0
      %417 = vmatpush1.msra.mxu0 0.0
      %418 = vmatprep.subr.mxu0 0.0
      %419 = vmatpush1.msra.mxu0 0.0
      %420 = vmatprep.subr.mxu0 0.0
      %421 = vmatpush1.msra.mxu0 0.0
      %422 = vmatprep.subr.mxu0 0.0
      %423 = vmatpush1.msra.mxu0 0.0
      %424 = vmatprep.subr.mxu0 0.0
      %425 = vmatpush1.msra.mxu0 0.0
      %426 = vmatprep.subr.mxu0 0.0
      %427 = vmatpush1.msra.mxu0 0.0
      %428 = vmatprep.mubr.f32.mxu0 0.0
      %v429 = vand.u32 %v181, 4294901760
      %v430 = vsub.f32 %v181, %v429
      %431 = vmatmul.mubr.f32.gmra.mrb[0].mxu0 %v430
      %v432 = vpop.f32.mrb[0].mxu0
      %v433 = vadd.f32 %v351, %v432
      %v434 = vpop.f32.mrb[0].mxu0
      %435 = vmatprep.mubr.f32.mxu0 0.0
      %v436 = vand.u32 %v184, 4294901760
      %v437 = vsub.f32 %v184, %v436
      %438 = vmatmul.mubr.f32.gmra.mrb[0].mxu0 %v437
      %v439 = vpop.f32.mrb[0].mxu0
      %v440 = vadd.f32 %v357, %v439
      %v441 = vpop.f32.mrb[0].mxu0
      %442 = vdwg.mxu0
      %443 = vmatprep.subr.mxu0 0.0
      %v444 = vand.u32 %v177, 4294901760
      %445 = vmatpush1.msra.mxu0 %v444
      %446 = vmatprep.subr.mxu0 0.0
      %v447 = vand.u32 %v178, 4294901760
      %448 = vmatpush1.msra.mxu0 %v447
      %449 = vmatprep.subr.mxu0 0.0
      %450 = vmatpush1.msra.mxu0 0.0
      %451 = vmatprep.subr.mxu0 0.0
      %452 = vmatpush1.msra.mxu0 0.0
      %453 = vmatprep.subr.mxu0 0.0
      %454 = vmatpush1.msra.mxu0 0.0
      %455 = vmatprep.subr.mxu0 0.0
      %456 = vmatpush1.msra.mxu0 0.0
      %457 = vmatprep.subr.mxu0 0.0
      %458 = vmatpush1.msra.mxu0 0.0
      %459 = vmatprep.subr.mxu0 0.0
      %460 = vmatpush1.msra.mxu0 0.0
      %461 = vmatprep.subr.mxu0 0.0
      %462 = vmatpush1.msra.mxu0 0.0
      %463 = vmatprep.subr.mxu0 0.0
      %464 = vmatpush1.msra.mxu0 0.0
      %465 = vmatprep.subr.mxu0 0.0
      %466 = vmatpush1.msra.mxu0 0.0
      %467 = vmatprep.subr.mxu0 0.0
      %468 = vmatpush1.msra.mxu0 0.0
      %469 = vmatprep.subr.mxu0 0.0
      %470 = vmatpush1.msra.mxu0 0.0
      %471 = vmatprep.subr.mxu0 0.0
      %472 = vmatpush1.msra.mxu0 0.0
      %473 = vmatprep.subr.mxu0 0.0
      %474 = vmatpush1.msra.mxu0 0.0
      %475 = vmatprep.subr.mxu0 0.0
      %476 = vmatpush1.msra.mxu0 0.0
      %477 = vmatprep.subr.mxu0 0.0
      %478 = vmatpush1.msra.mxu0 0.0
      %479 = vmatprep.subr.mxu0 0.0
      %480 = vmatpush1.msra.mxu0 0.0
      %481 = vmatprep.subr.mxu0 0.0
      %482 = vmatpush1.msra.mxu0 0.0
      %483 = vmatprep.subr.mxu0 0.0
      %484 = vmatpush1.msra.mxu0 0.0
      %485 = vmatprep.subr.mxu0 0.0
      %486 = vmatpush1.msra.mxu0 0.0
      %487 = vmatprep.subr.mxu0 0.0
      %488 = vmatpush1.msra.mxu0 0.0
      %489 = vmatprep.subr.mxu0 0.0
      %490 = vmatpush1.msra.mxu0 0.0
      %491 = vmatprep.subr.mxu0 0.0
      %492 = vmatpush1.msra.mxu0 0.0
      %493 = vmatprep.subr.mxu0 0.0
      %494 = vmatpush1.msra.mxu0 0.0
      %495 = vmatprep.subr.mxu0 0.0
      %496 = vmatpush1.msra.mxu0 0.0
      %497 = vmatprep.subr.mxu0 0.0
      %498 = vmatpush1.msra.mxu0 0.0
      %499 = vmatprep.subr.mxu0 0.0
      %500 = vmatpush1.msra.mxu0 0.0
      %501 = vmatprep.subr.mxu0 0.0
      %502 = vmatpush1.msra.mxu0 0.0
      %503 = vmatprep.subr.mxu0 0.0
      %504 = vmatpush1.msra.mxu0 0.0
      %505 = vmatprep.subr.mxu0 0.0
      %506 = vmatpush1.msra.mxu0 0.0
      %507 = vmatprep.subr.mxu0 0.0
      %508 = vmatpush1.msra.mxu0 0.0
      %509 = vmatprep.mubr.f32.mxu0 0.0
      %v510 = vand.u32 %v181, 4294901760
      %v511 = vsub.f32 %v181, %v510
      %v512 = vand.u32 %v511, 4294901760
      %513 = vmatmul.mubr.f32.gmra.mrb[0].mxu0 %v512
      %v514 = vpop.f32.mrb[0].mxu0
      %v515 = vadd.f32 %v433, %v514
      %v516 = vpop.f32.mrb[0].mxu0
      %517 = vmatprep.mubr.f32.mxu0 0.0
      %v518 = vand.u32 %v184, 4294901760
      %v519 = vsub.f32 %v184, %v518
      %v520 = vand.u32 %v519, 4294901760
      %521 = vmatmul.mubr.f32.gmra.mrb[0].mxu0 %v520
      %v522 = vpop.f32.mrb[0].mxu0
      %v523 = vadd.f32 %v440, %v522
      %v524 = vpop.f32.mrb[0].mxu0
      %525 = vdwg.mxu0
      %526 = vmatprep.subr.mxu0 0.0
      %v527 = vand.u32 %v177, 4294901760
      %v528 = vsub.f32 %v177, %v527
      %v529 = vand.u32 %v528, 4294901760
      %530 = vmatpush1.msra.mxu0 %v529
      %531 = vmatprep.subr.mxu0 0.0
      %v532 = vand.u32 %v178, 4294901760
      %v533 = vsub.f32 %v178, %v532
      %v534 = vand.u32 %v533, 4294901760
      %535 = vmatpush1.msra.mxu0 %v534
      %536 = vmatprep.subr.mxu0 0.0
      %537 = vmatpush1.msra.mxu0 0.0
      %538 = vmatprep.subr.mxu0 0.0
      %539 = vmatpush1.msra.mxu0 0.0
      %540 = vmatprep.subr.mxu0 0.0
      %541 = vmatpush1.msra.mxu0 0.0
      %542 = vmatprep.subr.mxu0 0.0
      %543 = vmatpush1.msra.mxu0 0.0
      %544 = vmatprep.subr.mxu0 0.0
      %545 = vmatpush1.msra.mxu0 0.0
      %546 = vmatprep.subr.mxu0 0.0
      %547 = vmatpush1.msra.mxu0 0.0
      %548 = vmatprep.subr.mxu0 0.0
      %549 = vmatpush1.msra.mxu0 0.0
      %550 = vmatprep.subr.mxu0 0.0
      %551 = vmatpush1.msra.mxu0 0.0
      %552 = vmatprep.subr.mxu0 0.0
      %553 = vmatpush1.msra.mxu0 0.0
      %554 = vmatprep.subr.mxu0 0.0
      %555 = vmatpush1.msra.mxu0 0.0
      %556 = vmatprep.subr.mxu0 0.0
      %557 = vmatpush1.msra.mxu0 0.0
      %558 = vmatprep.subr.mxu0 0.0
      %559 = vmatpush1.msra.mxu0 0.0
      %560 = vmatprep.subr.mxu0 0.0
      %561 = vmatpush1.msra.mxu0 0.0
      %562 = vmatprep.subr.mxu0 0.0
      %563 = vmatpush1.msra.mxu0 0.0
      %564 = vmatprep.subr.mxu0 0.0
      %565 = vmatpush1.msra.mxu0 0.0
      %566 = vmatprep.subr.mxu0 0.0
      %567 = vmatpush1.msra.mxu0 0.0
      %568 = vmatprep.subr.mxu0 0.0
      %569 = vmatpush1.msra.mxu0 0.0
      %570 = vmatprep.subr.mxu0 0.0
      %571 = vmatpush1.msra.mxu0 0.0
      %572 = vmatprep.subr.mxu0 0.0
      %573 = vmatpush1.msra.mxu0 0.0
      %574 = vmatprep.subr.mxu0 0.0
      %575 = vmatpush1.msra.mxu0 0.0
      %576 = vmatprep.subr.mxu0 0.0
      %577 = vmatpush1.msra.mxu0 0.0
      %578 = vmatprep.subr.mxu0 0.0
      %579 = vmatpush1.msra.mxu0 0.0
      %580 = vmatprep.subr.mxu0 0.0
      %581 = vmatpush1.msra.mxu0 0.0
      %582 = vmatprep.subr.mxu0 0.0
      %583 = vmatpush1.msra.mxu0 0.0
      %584 = vmatprep.subr.mxu0 0.0
      %585 = vmatpush1.msra.mxu0 0.0
      %586 = vmatprep.subr.mxu0 0.0
      %587 = vmatpush1.msra.mxu0 0.0
      %588 = vmatprep.subr.mxu0 0.0
      %589 = vmatpush1.msra.mxu0 0.0
      %590 = vmatprep.subr.mxu0 0.0
      %591 = vmatpush1.msra.mxu0 0.0
      %592 = vmatprep.subr.mxu0 0.0
      %593 = vmatpush1.msra.mxu0 0.0
      %594 = vmatprep.subr.mxu0 0.0
      %595 = vmatpush1.msra.mxu0 0.0
      %596 = vmatprep.mubr.f32.mxu0 0.0
      %v597 = vand.u32 %v181, 4294901760
      %598 = vmatmul.mubr.f32.gmra.mrb[0].mxu0 %v597
      %v599 = vpop.f32.mrb[0].mxu0
      %v600 = vadd.f32 %v515, %v599
      %v601 = vpop.f32.mrb[0].mxu0
      %602 = vmatprep.mubr.f32.mxu0 0.0
      %v603 = vand.u32 %v184, 4294901760
      %604 = vmatmul.mubr.f32.gmra.mrb[0].mxu0 %v603
      %v605 = vpop.f32.mrb[0].mxu0
      %v606 = vadd.f32 %v523, %v605
      %v607 = vpop.f32.mrb[0].mxu0
      %608 = vdwg.mxu0
      %609 = vmatprep.subr.mxu0 0.0
      %v610 = vand.u32 %v177, 4294901760
      %611 = vmatpush1.msra.mxu0 %v610
      %612 = vmatprep.subr.mxu0 0.0
      %v613 = vand.u32 %v178, 4294901760
      %614 = vmatpush1.msra.mxu0 %v613
      %615 = vmatprep.subr.mxu0 0.0
      %616 = vmatpush1.msra.mxu0 0.0
      %617 = vmatprep.subr.mxu0 0.0
      %618 = vmatpush1.msra.mxu0 0.0
      %619 = vmatprep.subr.mxu0 0.0
      %620 = vmatpush1.msra.mxu0 0.0
      %621 = vmatprep.subr.mxu0 0.0
      %622 = vmatpush1.msra.mxu0 0.0
      %623 = vmatprep.subr.mxu0 0.0
      %624 = vmatpush1.msra.mxu0 0.0
      %625 = vmatprep.subr.mxu0 0.0
      %626 = vmatpush1.msra.mxu0 0.0
      %627 = vmatprep.subr.mxu0 0.0
      %628 = vmatpush1.msra.mxu0 0.0
      %629 = vmatprep.subr.mxu0 0.0
      %630 = vmatpush1.msra.mxu0 0.0
      %631 = vmatprep.subr.mxu0 0.0
      %632 = vmatpush1.msra.mxu0 0.0
      %633 = vmatprep.subr.mxu0 0.0
      %634 = vmatpush1.msra.mxu0 0.0
      %635 = vmatprep.subr.mxu0 0.0
      %636 = vmatpush1.msra.mxu0 0.0
      %637 = vmatprep.subr.mxu0 0.0
      %638 = vmatpush1.msra.mxu0 0.0
      %639 = vmatprep.subr.mxu0 0.0
      %640 = vmatpush1.msra.mxu0 0.0
      %641 = vmatprep.subr.mxu0 0.0
      %642 = vmatpush1.msra.mxu0 0.0
      %643 = vmatprep.subr.mxu0 0.0
      %644 = vmatpush1.msra.mxu0 0.0
      %645 = vmatprep.subr.mxu0 0.0
      %646 = vmatpush1.msra.mxu0 0.0
      %647 = vmatprep.subr.mxu0 0.0
      %648 = vmatpush1.msra.mxu0 0.0
      %649 = vmatprep.subr.mxu0 0.0
      %650 = vmatpush1.msra.mxu0 0.0
      %651 = vmatprep.subr.mxu0 0.0
      %652 = vmatpush1.msra.mxu0 0.0
      %653 = vmatprep.subr.mxu0 0.0
      %654 = vmatpush1.msra.mxu0 0.0
      %655 = vmatprep.subr.mxu0 0.0
      %656 = vmatpush1.msra.mxu0 0.0
      %657 = vmatprep.subr.mxu0 0.0
      %658 = vmatpush1.msra.mxu0 0.0
      %659 = vmatprep.subr.mxu0 0.0
      %660 = vmatpush1.msra.mxu0 0.0
      %661 = vmatprep.subr.mxu0 0.0
      %662 = vmatpush1.msra.mxu0 0.0
      %663 = vmatprep.subr.mxu0 0.0
      %664 = vmatpush1.msra.mxu0 0.0
      %665 = vmatprep.subr.mxu0 0.0
      %666 = vmatpush1.msra.mxu0 0.0
      %667 = vmatprep.subr.mxu0 0.0
      %668 = vmatpush1.msra.mxu0 0.0
      %669 = vmatprep.subr.mxu0 0.0
      %670 = vmatpush1.msra.mxu0 0.0
      %671 = vmatprep.subr.mxu0 0.0
      %672 = vmatpush1.msra.mxu0 0.0
      %673 = vmatprep.subr.mxu0 0.0
      %674 = vmatpush1.msra.mxu0 0.0
      %675 = vmatprep.mubr.f32.mxu0 0.0
      %v676 = vand.u32 %v181, 4294901760
      %677 = vmatmul.mubr.f32.gmra.mrb[0].mxu0 %v676
      %v678 = vpop.f32.mrb[0].mxu0
      %v679 = vadd.f32 %v600, %v678
      %v680 = vpop.f32.mrb[0].mxu0
      %681 = vmatprep.mubr.f32.mxu0 0.0
      %v682 = vand.u32 %v184, 4294901760
      %683 = vmatmul.mubr.f32.gmra.mrb[0].mxu0 %v682
      %v684 = vpop.f32.mrb[0].mxu0
      %v685 = vadd.f32 %v606, %v684
      %v686 = vpop.f32.mrb[0].mxu0
      %687 = vdwg.mxu0
      %vm688 = vcmask 64512
      %689 = vst.msk [vmem:[%s174] sm:$0xff] %vm688, %v679
      %690 = vst.msk [vmem:[%s174 + $0x8] sm:$0xff] %vm688, %v685
      %p691 = scmp.lt.s32.totalorder %s17, 1
      %s692 = scalar_select %p691, %s17, 1
      %p693 = scmp.lt.s32.totalorder %s18, 0
      %s694 = scalar_select %p693, %s18, 0
      %s695 = smul.addr %s692, 2
      %s696 = sadd.s32 %s694, %s695
      %s697 = smul.addr %s696, 8
      %s698 = scalar_lea.vmem %s2, %s697
      // Predicated region
      $region29: #{tpu_custom_call.1} parent=27 // pred_check
        %p699 = pneg %p94
      $region30: #{tpu_custom_call.1} parent=27 // pred_check_branch
        %701 = sbr.rel (%p699) target = $region32
      $region31: #{tpu_custom_call.1} parent=27 // pred_region
        _
      $region32: #{tpu_custom_call.1} parent=27 // pred_fallthru
        _
    $region28: #{tpu_custom_call.1} parent=5 // pred_fallthru
      _
    %p702 = scmp.le.s32.totalorder 2, %s8
    // Predicated region
    $region33: #{tpu_custom_call.1} parent=5 // pred_check
      %p703 = pneg %p702
    $region34: #{tpu_custom_call.1} parent=5 // pred_check_branch
      %705 = sbr.rel (%p703) target = $region36
    $region35: #{tpu_custom_call.1} parent=5 // pred_region
      %s706 = ssub.s32 %s8, 2
      // Predicated region
      $region37: #{tpu_custom_call.1} parent=35 // pred_check
        %p707 = pneg %p100
      $region38: #{tpu_custom_call.1} parent=35 // pred_check_branch
        %709 = sbr.rel (%p707) target = $region40
      $region39: #{tpu_custom_call.1} parent=35 // pred_region
        %p710 = scmp.lt.s32.totalorder %s19, 1
        %s711 = scalar_select %p710, %s19, 1
        %p712 = scmp.lt.s32.totalorder %s20, 0
        %s713 = scalar_select %p712, %s20, 0
        %s714 = smul.addr %s711, 2
        %s715 = sadd.s32 %s713, %s714
        %s716 = smul.addr %s715, 8
        %s717 = scalar_lea.vmem %s2, %s716
      $region40: #{tpu_custom_call.1} parent=35 // pred_fallthru
        _
    $region36: #{tpu_custom_call.1} parent=5 // pred_fallthru
      _
  $region6: #{tpu_custom_call.1} parent=0 // loop_footer
    %s12 = sadd.s32 1, %s8
  $region7: #{tpu_custom_call.1} parent=0 // loop_footer_branch
    %7 = sbr.rel target = $region3
  $region8: #{tpu_custom_call.1} parent=0 // loop_exit
    _

</llo_original>
